<compile_context>
chip_gen: v5e
topology: v5e:2x2
jax: 0.10.0
libtpu: 0.0.40
codegen_flags: <defaults>
</compile_context>

<pallas_src>
import jax
import jax.numpy as jnp
from jax.experimental import pallas as pl
from jax.experimental.pallas import tpu as pltpu


def _hbm_copy_kernel(param_hbm_ref, out_hbm_ref):
    """Copy the whole parameter HBM buffer into the output HBM buffer.

    A single full-array DMA: no grid, no VMEM staging, no per-tile overhead.
    """
    def body(sem):
        cp = pltpu.make_async_copy(param_hbm_ref, out_hbm_ref, sem)
        cp.start()
        cp.wait()

    pl.run_scoped(body, pltpu.SemaphoreType.DMA(()))


def _pallas_hbm_copy(param: jax.Array) -> jax.Array:
    """Materialize `param` into a fresh buffer via one HBM->HBM DMA."""
    return pl.pallas_call(
        _hbm_copy_kernel,
        out_shape=jax.ShapeDtypeStruct(param.shape, param.dtype),
        in_specs=[pl.BlockSpec(memory_space=pl.ANY)],
        out_specs=pl.BlockSpec(memory_space=pl.ANY),
    )(param)


def parameter_q_forward(param: jax.Array,
                        *,
                        materialize: bool = False,
                        small_bytes_threshold: int = 1 << 20) -> jax.Array:
    """Pallas equivalent of Parameter_Q.forward(): returns the parameter.

    materialize=False (default): zero-copy passthrough — forward() is the
    identity on the parameter, so generate no traffic at all.

    materialize=True: return a distinct buffer holding the same values.
    Tiny parameters use XLA's native copy; larger parameters use a single
    HBM->HBM DMA issued from a grid-less Pallas kernel.
    """
    if not materialize:
        # forward() returns the Parameter itself; do not generate traffic.
        return param

    nbytes = param.size * jnp.dtype(param.dtype).itemsize
    if param.ndim == 0 or nbytes < small_bytes_threshold:
        # Tiny parameter: custom-call launch overhead would dominate; let XLA
        # do the copy.
        return jnp.copy(param)

    # TODO(synk): on v7x one could split the copy across the two TensorCores'
    # DMA queues via core_map; HBM bandwidth is shared per chip so the win is
    # only descriptor-issue latency — not worth the complexity here.
    return _pallas_hbm_copy(param)


if __name__ == "__main__":
    # Deterministic parameter init (synthetic; no checkpoint load).
    key = jax.random.PRNGKey(0)
    k0, k1, k2 = jax.random.split(key, 3)

    # Small parameters consistent with a weight-holding module.
    param_f32 = jax.random.normal(k0, (32, 128), dtype=jnp.float32)
    # Ragged (non-8/128-aligned) bf16 parameter.
    param_bf16 = jax.random.normal(k1, (37, 200), dtype=jnp.float32).astype(jnp.bfloat16)
    # 1-D parameter (e.g. a bias vector).
    param_1d = jax.random.normal(k2, (777,), dtype=jnp.float32)

    # TODO(synk): SymQuant8bit quantizer is stored by the module but never
    # invoked in forward(), so it is intentionally not implemented here.

    # 1) Default path: zero-copy identity — exactly what forward() does.
    out_fast = jax.block_until_ready(parameter_q_forward(param_f32))
    assert out_fast.shape == param_f32.shape and out_fast.dtype == param_f32.dtype
    assert bool(jnp.array_equal(out_fast, param_f32)), "zero-copy passthrough mismatch"

    # 2) Tiny-parameter materialize path: plain XLA copy (below the threshold).
    out_small = jax.block_until_ready(parameter_q_forward(param_bf16, materialize=True))
    assert out_small.shape == param_bf16.shape and out_small.dtype == param_bf16.dtype
    assert bool(jnp.array_equal(out_small, param_bf16)), "small-copy mismatch"

    # 3) Pallas HBM->HBM DMA path (forced by dropping the small-array
    #    threshold so the kernel is exercised even at these small shapes).
    for name, p in (("f32", param_f32), ("bf16", param_bf16), ("1d", param_1d)):
        out = jax.block_until_ready(
            parameter_q_forward(p, materialize=True, small_bytes_threshold=0))
        assert out.shape == p.shape and out.dtype == p.dtype
        assert bool(jnp.array_equal(out, p)), f"Pallas DMA copy mismatch ({name})"

    print("KERNEL_OK")
</pallas_src>

<mosaic_0001>
module attributes {stable_mosaic.version = 11 : i64} {
  func.func @_hbm_copy_kernel(%arg0: memref<32x128xf32, #tpu.memory_space<any>>, %arg1: memref<32x128xf32, #tpu.memory_space<any>>) attributes {dimension_semantics = [], scalar_prefetch = 0 : i64, scratch_operands = 0 : i64, tpu.core_type = #tpu.core_type<tc>} {
    "tpu.region"() ({
      %0 = tpu.sem_alloc : memref<!tpu.dma_semaphore, #tpu.memory_space<semaphore_mem>>
      tpu.enqueue_dma source(%arg0 : memref<32x128xf32, #tpu.memory_space<any>>) target(%arg1 : memref<32x128xf32, #tpu.memory_space<any>>) target_semaphore(%0 : memref<!tpu.dma_semaphore, #tpu.memory_space<semaphore_mem>>)
      tpu.wait_dma2 semaphore(%0 : memref<!tpu.dma_semaphore, #tpu.memory_space<semaphore_mem>>) src(%arg0 : memref<32x128xf32, #tpu.memory_space<any>>) dst(%arg1 : memref<32x128xf32, #tpu.memory_space<any>>)
      tpu.yield
    }) : () -> ()
    return
  }
}

</mosaic_0001>

<llo_original>
// kernel: tpu_custom_call.1
$region0: #{tpu_custom_call.1}
  #allocation0 [shape = 'u32[]', space=smem, size = 0x4, offset = 0x4, fixed_abs, tag = 'smem constant byte address 0x4 - core index']
  #allocation1 [shape = 'u32[72,128]{1,0:T(1,128)}', space=vmem, size = 0x9000, scoped, tag = 'internal scratch']
  #allocation3 [shape = 's32[]', space=sflag, size = 0x4, offset = 0, fixed_abs, tag = 'sflag constant byte address 0x0 - dummy sync flag']
  #allocation4 [shape = 'u32[0]{0}', space=smem, size = 0, offset = 0, fixed_abs, tag = 'smem constant byte address 0x0 - null']
  %s0 = inlined_call_operand.hbm [shape: f32[32,128], index: 0, kind: input, shape index: {}]
  %s1 = inlined_call_operand.hbm [shape: f32[32,128], index: 1, kind: output, shape index: {}]
  %s2 = sld [smem:[#allocation0]]
  $region3: #{tpu_custom_call.1} parent=0
    _
  %s4 = ssub.s32 1, %s2
  %s5 = scalar_select 0, %s4, %s2
  $region2: #{tpu_custom_call.1} parent=0
    #allocation2 [shape = 's32[1]{0}', space=sflag, size = 0x4, scoped, tag = 'scoped memory for tpu_custom_call.1']
    %s7 = sshll.u32 1, 14
    %s8 = sxor.u32 4294967295, %s7
    %s10 = sshll.u32 %s0, 4
    %s11 = int_to_ptr.hbm [resolvable:$true] %s10
    %s12 = sshll.u32 %s1, 4
    %s13 = int_to_ptr.hbm [resolvable:$true] %s12
    %16 = dma.general %s11, 512, %s13, [#allocation2], [#allocation3], [#allocation4], 0, 0
    %s17 = smul.u32 32, 1
    %s18 = sshll.u32 %s17, 4
    %19 = dma.done [#allocation2], %s18

</llo_original>
